<compile_context>
chip_gen: v5e
topology: v5e:2x2
jax: 0.10.0
libtpu: 0.0.40
codegen_flags: <defaults>
</compile_context>

<pallas_src>
import functools

import jax
import jax.numpy as jnp
from jax import lax
from jax.experimental import pallas as pl
from jax.experimental.pallas import tpu as pltpu


def _mlp_kernel(x_ref,
                w1_ref, b1_ref,
                w2_ref, b2_ref,
                w3_ref, b3_ref,
                w4_ref, b4_ref,
                w5_ref, b5_ref,
                o_ref):
    """Fused 5-layer MLP forward for one batch tile, feature-major layout.

    x_ref:  (F, tb)   bf16, batch on the lane axis (tb multiple of 128)
    wN_ref: (out, in) bf16, torch nn.Linear weight layout (N = 1..4)
    bN_ref: (out, 1)  f32 bias column
    w5_ref: (16, 1)   f32 last-layer weight column (VPU path, not MXU)
    o_ref:  (1, tb)   f32 lane-dense output tile
    """
    x = x_ref[...]                                                      # (F, tb) bf16

    def dense_relu_bf16(w_ref, b_ref, h):
        z = jnp.dot(w_ref[...], h,
                    precision=lax.Precision.DEFAULT,
                    preferred_element_type=jnp.float32) + b_ref[...]
        return jnp.maximum(z, 0.0).astype(jnp.bfloat16)

    h = dense_relu_bf16(w1_ref, b1_ref, x)                              # (128, tb)
    h = dense_relu_bf16(w2_ref, b2_ref, h)                              # (64, tb)
    h = dense_relu_bf16(w3_ref, b3_ref, h)                              # (32, tb)

    # Layer 4: keep the (16, tb) ReLU output in f32 (it feeds the VPU, not MXU).
    h = jnp.dot(w4_ref[...], h,
                precision=lax.Precision.DEFAULT,
                preferred_element_type=jnp.float32) + b4_ref[...]
    h = jnp.maximum(h, 0.0)                                             # (16, tb) f32

    # Final 16 -> 1 layer off the MXU: VPU broadcast-multiply + XLU sublane
    # reduce (an M=1 MXU push would be ~1% useful work).
    z = jnp.sum(h * w5_ref[...], axis=0, keepdims=True) + b5_ref[...]   # (1, tb)

    # scale_output(z, 2, 7) = 2 + (7 - 2) * sigmoid(z); lane-dense store.
    o_ref[...] = 2.0 + 5.0 * jax.nn.sigmoid(z)


def _round_up(n, m):
    return ((n + m - 1) // m) * m


def _cdiv(a, b):
    return -(-a // b)


# Per-buffer x tile at F=32 is (32, 8192) bf16 = 0.5 MiB; peak per-tile VMEM
# (double-buffered x/out + bf16 activations + f32 pre-cast layer outputs) stays
# around ~10 MiB, well under the 32 MiB scoped limit on v5e/v6e/v7x.
_TB_CAP = 8192


def _choose_tile(B, batch_tile):
    """Pick (tb, padded_B): balanced tiles, even tile count when split."""
    if batch_tile is not None:
        tb = int(batch_tile)
        if tb % 128 != 0:
            raise ValueError("batch_tile must be a multiple of 128")
        return tb, _round_up(B, tb)
    padded_min = _round_up(B, 128)
    if padded_min <= 1024:
        # Tiny batch: a single grid step; splitting would be pure overhead.
        return padded_min, padded_min
    num_tiles = max(2, _cdiv(padded_min, _TB_CAP))
    if num_tiles % 2 == 1:
        num_tiles += 1          # even count -> balanced across v7x's 2 TCs
    tb = _round_up(_cdiv(B, num_tiles), 128)   # balanced tiles, minimal padding
    return tb, tb * num_tiles


@functools.partial(jax.jit, static_argnames=("batch_tile",))
def mapping_nn_forward(x, params, *, batch_tile=None):
    """x: (B, input_size) float32. params: dict name -> (w (out,in) f32, b (out,) f32)."""
    B, F = x.shape
    tb, padded_B = _choose_tile(B, batch_tile)
    num_tiles = padded_B // tb

    # Feature-major, lane-dense, bf16 x stream.  Padded rows are computed and
    # discarded below (zero rows are harmless through the network).
    xt = x.T.astype(jnp.bfloat16)                       # (F, B)
    if padded_B != B:
        xt = jnp.pad(xt, ((0, 0), (0, padded_B - B)))   # (F, padded_B)

    w1, b1 = params["fc1"]
    w2, b2 = params["fc2"]
    w3, b3 = params["fc3"]
    w4, b4 = params["fc4"]
    w5, b5 = params["fc5"]

    # MXU weights in bf16 (native single-pass); biases stay f32 columns so the
    # bias-add/ReLU epilogue accumulates in f32.  w5 stays f32 (VPU path).
    w1b = w1.astype(jnp.bfloat16)
    w2b = w2.astype(jnp.bfloat16)
    w3b = w3.astype(jnp.bfloat16)
    w4b = w4.astype(jnp.bfloat16)
    b1c = b1.reshape(-1, 1)
    b2c = b2.reshape(-1, 1)
    b3c = b3.reshape(-1, 1)
    b4c = b4.reshape(-1, 1)
    b5c = b5.reshape(-1, 1)
    w5c = w5.reshape(-1, 1)

    def const_spec(arr):
        # Full-extent 2-D block, same block for every grid step (no re-DMA).
        return pl.BlockSpec(arr.shape, lambda i: (0, 0))

    out = pl.pallas_call(
        _mlp_kernel,
        out_shape=jax.ShapeDtypeStruct((1, padded_B), jnp.float32),
        grid_spec=pltpu.PrefetchScalarGridSpec(
            num_scalar_prefetch=0,
            grid=(num_tiles,),
            in_specs=[
                pl.BlockSpec((F, tb), lambda i: (0, i)),   # lane-dense x tile
                const_spec(w1b), const_spec(b1c),
                const_spec(w2b), const_spec(b2c),
                const_spec(w3b), const_spec(b3c),
                const_spec(w4b), const_spec(b4c),
                const_spec(w5c), const_spec(b5c),
            ],
            out_specs=pl.BlockSpec((1, tb), lambda i: (0, i)),  # lane-dense out
        ),
        compiler_params=pltpu.CompilerParams(
            dimension_semantics=("parallel",),   # shard tiles across v7x's 2 TCs
            vmem_limit_bytes=32 * 1024 * 1024,   # ample headroom on all gens
        ),
    )(xt, w1b, b1c, w2b, b2c, w3b, b3c, w4b, b4c, w5c, b5c)

    # (1, padded_B) slab -> (B, 1), dropping padded columns.
    return out[0, :B][:, None]


def init_params(key, input_size):
    """Kaiming-normal (fan_in, relu) weights, zero bias — matches the torch init.

    Weights stored in torch nn.Linear layout (out_features, in_features), f32.
    """
    dims = [input_size, 128, 64, 32, 16, 1]
    names = ["fc1", "fc2", "fc3", "fc4", "fc5"]
    params = {}
    for name, fan_in, fan_out in zip(names, dims[:-1], dims[1:]):
        key, wk = jax.random.split(key)
        std = jnp.sqrt(2.0 / fan_in)  # kaiming_normal_, mode='fan_in', relu gain
        w = std * jax.random.normal(wk, (fan_out, fan_in), dtype=jnp.float32)
        b = jnp.zeros((fan_out,), dtype=jnp.float32)
        params[name] = (w, b)
    return params


def reference_forward(x, params):
    """Faithful f32 reference of the torch module."""
    h = x
    for name in ["fc1", "fc2", "fc3", "fc4"]:
        w, b = params[name]
        h = jnp.maximum(h @ w.T + b, 0.0)
    w, b = params["fc5"]
    z = h @ w.T + b
    return 2.0 + 5.0 * jax.nn.sigmoid(z)


def reference_forward_bf16(x, params):
    """Reference with the same bf16 operand rounding the kernel uses."""
    h = x.astype(jnp.bfloat16)
    for name in ["fc1", "fc2", "fc3"]:
        w, b = params[name]
        z = jnp.dot(h, w.T.astype(jnp.bfloat16),
                    preferred_element_type=jnp.float32) + b
        h = jnp.maximum(z, 0.0).astype(jnp.bfloat16)
    w4, b4 = params["fc4"]
    h = jnp.maximum(
        jnp.dot(h, w4.T.astype(jnp.bfloat16),
                preferred_element_type=jnp.float32) + b4, 0.0)   # f32
    w5, b5 = params["fc5"]
    z = h @ w5.T + b5
    return 2.0 + 5.0 * jax.nn.sigmoid(z)


if __name__ == "__main__":
    key = jax.random.PRNGKey(0)
    input_size = 32

    pkey, xkey, xkey2 = jax.random.split(key, 3)
    params = init_params(pkey, input_size)

    # Small batch: single grid step (tb clamps to 128, batch padded 8 -> 128).
    batch = 8
    x = jax.random.normal(xkey, (batch, input_size), dtype=jnp.float32)
    out = jax.block_until_ready(mapping_nn_forward(x, params))
    assert out.shape == (batch, 1)
    assert bool(jnp.all(jnp.isfinite(out)))
    ref_bf = reference_forward_bf16(x, params)
    ref_32 = reference_forward(x, params)
    # Tight vs. a bf16-matched reference (only accumulation-order differences);
    # loose vs. the f32 torch-faithful reference (bf16 operand rounding, output
    # range is [2, 7] so 0.1 abs is ~1-5% relative).
    assert jnp.allclose(out, ref_bf, atol=2e-3, rtol=0.0), \
        float(jnp.max(jnp.abs(out - ref_bf)))
    assert jnp.allclose(out, ref_32, atol=1e-1, rtol=0.0), \
        float(jnp.max(jnp.abs(out - ref_32)))

    # Non-multiple batch + explicit tile: exercises padding and a 3-step grid
    # with lane-dense multi-tile output stores.
    batch2 = 300
    x2 = jax.random.normal(xkey2, (batch2, input_size), dtype=jnp.float32)
    out2 = jax.block_until_ready(mapping_nn_forward(x2, params, batch_tile=128))
    assert out2.shape == (batch2, 1)
    assert bool(jnp.all(jnp.isfinite(out2)))
    ref2_bf = reference_forward_bf16(x2, params)
    ref2_32 = reference_forward(x2, params)
    assert jnp.allclose(out2, ref2_bf, atol=2e-3, rtol=0.0), \
        float(jnp.max(jnp.abs(out2 - ref2_bf)))
    assert jnp.allclose(out2, ref2_32, atol=1e-1, rtol=0.0), \
        float(jnp.max(jnp.abs(out2 - ref2_32)))

    print("KERNEL_OK")
</pallas_src>

<mosaic_0001>
module attributes {stable_mosaic.version = 11 : i64} {
  func.func @_mlp_kernel(%arg0: i32, %arg1: memref<32x128xbf16, #tpu.memory_space<vmem>>, %arg2: memref<128x32xbf16, #tpu.memory_space<vmem>>, %arg3: memref<128x1xf32, #tpu.memory_space<vmem>>, %arg4: memref<64x128xbf16, #tpu.memory_space<vmem>>, %arg5: memref<64x1xf32, #tpu.memory_space<vmem>>, %arg6: memref<32x64xbf16, #tpu.memory_space<vmem>>, %arg7: memref<32x1xf32, #tpu.memory_space<vmem>>, %arg8: memref<16x32xbf16, #tpu.memory_space<vmem>>, %arg9: memref<16x1xf32, #tpu.memory_space<vmem>>, %arg10: memref<16x1xf32, #tpu.memory_space<vmem>>, %arg11: memref<1x1xf32, #tpu.memory_space<vmem>>, %arg12: memref<1x128xf32, #tpu.memory_space<vmem>>) attributes {dimension_semantics = [#tpu.dimension_semantics<parallel>], iteration_bounds = array<i64: 1>, scalar_prefetch = 0 : i64, scratch_operands = 0 : i64, tpu.core_type = #tpu.core_type<tc>, window_params = [{transform_indices = @transform_0, window_bounds = array<i64: 32, 128>}, {pipeline_mode = #tpu.pipeline_mode<synchronous>, transform_indices = @transform_1, window_bounds = array<i64: 128, 32>}, {pipeline_mode = #tpu.pipeline_mode<synchronous>, transform_indices = @transform_2, window_bounds = array<i64: 128, 1>}, {pipeline_mode = #tpu.pipeline_mode<synchronous>, transform_indices = @transform_3, window_bounds = array<i64: 64, 128>}, {pipeline_mode = #tpu.pipeline_mode<synchronous>, transform_indices = @transform_4, window_bounds = array<i64: 64, 1>}, {pipeline_mode = #tpu.pipeline_mode<synchronous>, transform_indices = @transform_5, window_bounds = array<i64: 32, 64>}, {pipeline_mode = #tpu.pipeline_mode<synchronous>, transform_indices = @transform_6, window_bounds = array<i64: 32, 1>}, {pipeline_mode = #tpu.pipeline_mode<synchronous>, transform_indices = @transform_7, window_bounds = array<i64: 16, 32>}, {pipeline_mode = #tpu.pipeline_mode<synchronous>, transform_indices = @transform_8, window_bounds = array<i64: 16, 1>}, {pipeline_mode = #tpu.pipeline_mode<synchronous>, transform_indices = @transform_9, window_bounds = array<i64: 16, 1>}, {pipeline_mode = #tpu.pipeline_mode<synchronous>, transform_indices = @transform_10, window_bounds = array<i64: 1, 1>}, {transform_indices = @transform_11, window_bounds = array<i64: 1, 128>}]} {
    %c0 = arith.constant 0 : index
    %c0_0 = arith.constant 0 : index
    %0 = vector.load %arg1[%c0, %c0_0] : memref<32x128xbf16, #tpu.memory_space<vmem>>, vector<32x128xbf16>
    %c0_1 = arith.constant 0 : index
    %c0_2 = arith.constant 0 : index
    %1 = vector.load %arg2[%c0_1, %c0_2] : memref<128x32xbf16, #tpu.memory_space<vmem>>, vector<128x32xbf16>
    %cst = arith.constant dense<0.000000e+00> : vector<128x128xf32>
    %2 = tpu.matmul %1, %0, %cst {dimension_numbers = #tpu.dot_dimension_numbers<[1], [0], [0], [1], [0, 0, 1, 1], [], []>} : vector<128x32xbf16>, vector<32x128xbf16>, vector<128x128xf32> -> vector<128x128xf32>
    %c0_3 = arith.constant 0 : index
    %c0_4 = arith.constant 0 : index
    %3 = vector.load %arg3[%c0_3, %c0_4] : memref<128x1xf32, #tpu.memory_space<vmem>>, vector<128x1xf32>
    %4 = vector.broadcast %3 : vector<128x1xf32> to vector<128x128xf32>
    %5 = arith.addf %2, %4 : vector<128x128xf32>
    %cst_5 = arith.constant 0.000000e+00 : f32
    %6 = vector.broadcast %cst_5 : f32 to vector<128x128xf32>
    %7 = arith.maximumf %5, %6 : vector<128x128xf32>
    %8 = arith.truncf %7 : vector<128x128xf32> to vector<128x128xbf16>
    %c0_6 = arith.constant 0 : index
    %c0_7 = arith.constant 0 : index
    %9 = vector.load %arg4[%c0_6, %c0_7] : memref<64x128xbf16, #tpu.memory_space<vmem>>, vector<64x128xbf16>
    %cst_8 = arith.constant dense<0.000000e+00> : vector<64x128xf32>
    %10 = tpu.matmul %9, %8, %cst_8 {dimension_numbers = #tpu.dot_dimension_numbers<[1], [0], [0], [1], [0, 0, 1, 1], [], []>} : vector<64x128xbf16>, vector<128x128xbf16>, vector<64x128xf32> -> vector<64x128xf32>
    %c0_9 = arith.constant 0 : index
    %c0_10 = arith.constant 0 : index
    %11 = vector.load %arg5[%c0_9, %c0_10] : memref<64x1xf32, #tpu.memory_space<vmem>>, vector<64x1xf32>
    %12 = vector.broadcast %11 : vector<64x1xf32> to vector<64x128xf32>
    %13 = arith.addf %10, %12 : vector<64x128xf32>
    %cst_11 = arith.constant 0.000000e+00 : f32
    %14 = vector.broadcast %cst_11 : f32 to vector<64x128xf32>
    %15 = arith.maximumf %13, %14 : vector<64x128xf32>
    %16 = arith.truncf %15 : vector<64x128xf32> to vector<64x128xbf16>
    %c0_12 = arith.constant 0 : index
    %c0_13 = arith.constant 0 : index
    %17 = vector.load %arg6[%c0_12, %c0_13] : memref<32x64xbf16, #tpu.memory_space<vmem>>, vector<32x64xbf16>
    %cst_14 = arith.constant dense<0.000000e+00> : vector<32x128xf32>
    %18 = tpu.matmul %17, %16, %cst_14 {dimension_numbers = #tpu.dot_dimension_numbers<[1], [0], [0], [1], [0, 0, 1, 1], [], []>} : vector<32x64xbf16>, vector<64x128xbf16>, vector<32x128xf32> -> vector<32x128xf32>
    %c0_15 = arith.constant 0 : index
    %c0_16 = arith.constant 0 : index
    %19 = vector.load %arg7[%c0_15, %c0_16] : memref<32x1xf32, #tpu.memory_space<vmem>>, vector<32x1xf32>
    %20 = vector.broadcast %19 : vector<32x1xf32> to vector<32x128xf32>
    %21 = arith.addf %18, %20 : vector<32x128xf32>
    %cst_17 = arith.constant 0.000000e+00 : f32
    %22 = vector.broadcast %cst_17 : f32 to vector<32x128xf32>
    %23 = arith.maximumf %21, %22 : vector<32x128xf32>
    %24 = arith.truncf %23 : vector<32x128xf32> to vector<32x128xbf16>
    %c0_18 = arith.constant 0 : index
    %c0_19 = arith.constant 0 : index
    %25 = vector.load %arg8[%c0_18, %c0_19] : memref<16x32xbf16, #tpu.memory_space<vmem>>, vector<16x32xbf16>
    %cst_20 = arith.constant dense<0.000000e+00> : vector<16x128xf32>
    %26 = tpu.matmul %25, %24, %cst_20 {dimension_numbers = #tpu.dot_dimension_numbers<[1], [0], [0], [1], [0, 0, 1, 1], [], []>} : vector<16x32xbf16>, vector<32x128xbf16>, vector<16x128xf32> -> vector<16x128xf32>
    %c0_21 = arith.constant 0 : index
    %c0_22 = arith.constant 0 : index
    %27 = vector.load %arg9[%c0_21, %c0_22] : memref<16x1xf32, #tpu.memory_space<vmem>>, vector<16x1xf32>
    %28 = vector.broadcast %27 : vector<16x1xf32> to vector<16x128xf32>
    %29 = arith.addf %26, %28 : vector<16x128xf32>
    %cst_23 = arith.constant 0.000000e+00 : f32
    %30 = vector.broadcast %cst_23 : f32 to vector<16x128xf32>
    %31 = arith.maximumf %29, %30 : vector<16x128xf32>
    %c0_24 = arith.constant 0 : index
    %c0_25 = arith.constant 0 : index
    %32 = vector.load %arg10[%c0_24, %c0_25] : memref<16x1xf32, #tpu.memory_space<vmem>>, vector<16x1xf32>
    %33 = vector.broadcast %32 : vector<16x1xf32> to vector<16x128xf32>
    %34 = arith.mulf %31, %33 : vector<16x128xf32>
    %cst_26 = arith.constant dense<0.000000e+00> : vector<128xf32>
    %35 = vector.multi_reduction <add>, %34, %cst_26 [0] : vector<16x128xf32> to vector<128xf32>
    %36 = vector.shape_cast %35 : vector<128xf32> to vector<1x128xf32>
    %c0_27 = arith.constant 0 : index
    %c0_28 = arith.constant 0 : index
    %37 = vector.load %arg11[%c0_27, %c0_28] : memref<1x1xf32, #tpu.memory_space<vmem>>, vector<1x1xf32>
    %38 = vector.broadcast %37 : vector<1x1xf32> to vector<1x128xf32>
    %39 = arith.addf %36, %38 : vector<1x128xf32>
    %40 = arith.negf %39 : vector<1x128xf32>
    %41 = math.exp %40 : vector<1x128xf32>
    %cst_29 = arith.constant 1.000000e+00 : f32
    %42 = vector.broadcast %cst_29 : f32 to vector<1x128xf32>
    %43 = arith.addf %42, %41 : vector<1x128xf32>
    %44 = arith.divf %42, %43 : vector<1x128xf32>
    %cst_30 = arith.constant 5.000000e+00 : f32
    %45 = vector.broadcast %cst_30 : f32 to vector<1x128xf32>
    %46 = arith.mulf %45, %44 : vector<1x128xf32>
    %cst_31 = arith.constant 2.000000e+00 : f32
    %47 = vector.broadcast %cst_31 : f32 to vector<1x128xf32>
    %48 = arith.addf %47, %46 : vector<1x128xf32>
    %c0_32 = arith.constant 0 : index
    %c0_33 = arith.constant 0 : index
    %49 = vector.load %arg12[%c0_32, %c0_33] : memref<1x128xf32, #tpu.memory_space<vmem>>, vector<1x128xf32>
    tpu.vector_store %arg12[%c0_32, %c0_33], %48 {strides = array<i32>} : memref<1x128xf32, #tpu.memory_space<vmem>>, vector<1x128xf32>,
    return
  }
  func.func @transform_0(%arg0: i32) -> (i32, i32) {
    %c0_i32 = arith.constant 0 : i32
    %c0_i32_0 = arith.constant 0 : i32
    return %c0_i32, %arg0 : i32, i32
  }
  func.func @transform_1(%arg0: i32) -> (i32, i32) {
    %c0_i32 = arith.constant 0 : i32
    %c0_i32_0 = arith.constant 0 : i32
    %c0_i32_1 = arith.constant 0 : i32
    return %c0_i32, %c0_i32_0 : i32, i32
  }
  func.func @transform_2(%arg0: i32) -> (i32, i32) {
    %c0_i32 = arith.constant 0 : i32
    %c0_i32_0 = arith.constant 0 : i32
    %c0_i32_1 = arith.constant 0 : i32
    return %c0_i32, %c0_i32_0 : i32, i32
  }
  func.func @transform_3(%arg0: i32) -> (i32, i32) {
    %c0_i32 = arith.constant 0 : i32
    %c0_i32_0 = arith.constant 0 : i32
    %c0_i32_1 = arith.constant 0 : i32
    return %c0_i32, %c0_i32_0 : i32, i32
  }
  func.func @transform_4(%arg0: i32) -> (i32, i32) {
    %c0_i32 = arith.constant 0 : i32
    %c0_i32_0 = arith.constant 0 : i32
    %c0_i32_1 = arith.constant 0 : i32
    return %c0_i32, %c0_i32_0 : i32, i32
  }
  func.func @transform_5(%arg0: i32) -> (i32, i32) {
    %c0_i32 = arith.constant 0 : i32
    %c0_i32_0 = arith.constant 0 : i32
    %c0_i32_1 = arith.constant 0 : i32
    return %c0_i32, %c0_i32_0 : i32, i32
  }
  func.func @transform_6(%arg0: i32) -> (i32, i32) {
    %c0_i32 = arith.constant 0 : i32
    %c0_i32_0 = arith.constant 0 : i32
    %c0_i32_1 = arith.constant 0 : i32
    return %c0_i32, %c0_i32_0 : i32, i32
  }
  func.func @transform_7(%arg0: i32) -> (i32, i32) {
    %c0_i32 = arith.constant 0 : i32
    %c0_i32_0 = arith.constant 0 : i32
    %c0_i32_1 = arith.constant 0 : i32
    return %c0_i32, %c0_i32_0 : i32, i32
  }
  func.func @transform_8(%arg0: i32) -> (i32, i32) {
    %c0_i32 = arith.constant 0 : i32
    %c0_i32_0 = arith.constant 0 : i32
    %c0_i32_1 = arith.constant 0 : i32
    return %c0_i32, %c0_i32_0 : i32, i32
  }
  func.func @transform_9(%arg0: i32) -> (i32, i32) {
    %c0_i32 = arith.constant 0 : i32
    %c0_i32_0 = arith.constant 0 : i32
    %c0_i32_1 = arith.constant 0 : i32
    return %c0_i32, %c0_i32_0 : i32, i32
  }
  func.func @transform_10(%arg0: i32) -> (i32, i32) {
    %c0_i32 = arith.constant 0 : i32
    %c0_i32_0 = arith.constant 0 : i32
    %c0_i32_1 = arith.constant 0 : i32
    return %c0_i32, %c0_i32_0 : i32, i32
  }
  func.func @transform_11(%arg0: i32) -> (i32, i32) {
    %c0_i32 = arith.constant 0 : i32
    %c0_i32_0 = arith.constant 0 : i32
    return %c0_i32, %arg0 : i32, i32
  }
}

</mosaic_0001>

<llo_original>
// kernel: mapping_nn_forward.1
$region0: #{mapping_nn_forward.1}
  #allocation0 [shape = 'u32[]', space=smem, size = 0x4, offset = 0x4, fixed_abs, tag = 'smem constant byte address 0x4 - core index']
  #allocation1 [shape = 'u32[72,128]{1,0:T(1,128)}', space=vmem, size = 0x9000, scoped, tag = 'internal scratch']
  #allocation2 [shape = 'f32[1,1]{1,0:T(1,128)S(1)}', space=vmem, size = 0x200, scoped, tag = 'scoped memory for mapping_nn_forward.1']
  %s0 = inlined_call_operand.vmem [shape: bf16[32,128], index: 0, kind: input, shape index: {}]
  %s1 = inlined_call_operand.vmem [shape: bf16[128,32], index: 1, kind: input, shape index: {}]
  %s2 = inlined_call_operand.vmem [shape: f32[128,1], index: 2, kind: input, shape index: {}]
  %s3 = inlined_call_operand.vmem [shape: bf16[64,128], index: 3, kind: input, shape index: {}]
  %s4 = inlined_call_operand.vmem [shape: f32[64,1], index: 4, kind: input, shape index: {}]
  %s5 = inlined_call_operand.vmem [shape: bf16[32,64], index: 5, kind: input, shape index: {}]
  %s6 = inlined_call_operand.vmem [shape: f32[32,1], index: 6, kind: input, shape index: {}]
  %s7 = inlined_call_operand.vmem [shape: bf16[16,32], index: 7, kind: input, shape index: {}]
  %s8 = inlined_call_operand.vmem [shape: f32[16,1], index: 8, kind: input, shape index: {}]
  %s9 = inlined_call_operand.vmem [shape: f32[16,1], index: 9, kind: input, shape index: {}]
  %s10 = inlined_call_operand.<no memory space> [shape: f32[1,1], index: 10, kind: input, shape index: {}]
  %s11 = inlined_call_operand.vmem [shape: f32[1,128], index: 11, kind: output, shape index: {}]
  %s12 = sld [smem:[#allocation0]]
  $region54: #{mapping_nn_forward.1} parent=0
    _
  %s14 = ssub.s32 1, %s12
  %s15 = scalar_select 0, %s14, %s12
  %v16 = vstv %s10
  %17 = vst [vmem:[#allocation2] sm:$0x1] %v16
  // Predicated region
  $region2: #{mapping_nn_forward.1} parent=0 // pred_check
    _
  $region3: #{mapping_nn_forward.1} parent=0 // pred_check_branch
    %19 = sbr.rel (0) target = $region5
  $region4: #{mapping_nn_forward.1} parent=0 // pred_region
    _
  $region5: #{mapping_nn_forward.1} parent=0 // pred_fallthru
    _
  // Predicated region
  $region6: #{mapping_nn_forward.1} parent=0 // pred_check
    _
  $region7: #{mapping_nn_forward.1} parent=0 // pred_check_branch
    %21 = sbr.rel (0) target = $region9
  $region8: #{mapping_nn_forward.1} parent=0 // pred_region
    _
  $region9: #{mapping_nn_forward.1} parent=0 // pred_fallthru
    _
  // Predicated region
  $region10: #{mapping_nn_forward.1} parent=0 // pred_check
    _
  $region11: #{mapping_nn_forward.1} parent=0 // pred_check_branch
    %23 = sbr.rel (0) target = $region13
  $region12: #{mapping_nn_forward.1} parent=0 // pred_region
    _
  $region13: #{mapping_nn_forward.1} parent=0 // pred_fallthru
    _
  // Predicated region
  $region14: #{mapping_nn_forward.1} parent=0 // pred_check
    _
  $region15: #{mapping_nn_forward.1} parent=0 // pred_check_branch
    %25 = sbr.rel (0) target = $region17
  $region16: #{mapping_nn_forward.1} parent=0 // pred_region
    _
  $region17: #{mapping_nn_forward.1} parent=0 // pred_fallthru
    _
  // Predicated region
  $region18: #{mapping_nn_forward.1} parent=0 // pred_check
    _
  $region19: #{mapping_nn_forward.1} parent=0 // pred_check_branch
    %27 = sbr.rel (0) target = $region21
  $region20: #{mapping_nn_forward.1} parent=0 // pred_region
    _
  $region21: #{mapping_nn_forward.1} parent=0 // pred_fallthru
    _
  // Predicated region
  $region22: #{mapping_nn_forward.1} parent=0 // pred_check
    _
  $region23: #{mapping_nn_forward.1} parent=0 // pred_check_branch
    %29 = sbr.rel (0) target = $region25
  $region24: #{mapping_nn_forward.1} parent=0 // pred_region
    _
  $region25: #{mapping_nn_forward.1} parent=0 // pred_fallthru
    _
  // Predicated region
  $region26: #{mapping_nn_forward.1} parent=0 // pred_check
    _
  $region27: #{mapping_nn_forward.1} parent=0 // pred_check_branch
    %31 = sbr.rel (0) target = $region29
  $region28: #{mapping_nn_forward.1} parent=0 // pred_region
    _
  $region29: #{mapping_nn_forward.1} parent=0 // pred_fallthru
    _
  // Predicated region
  $region30: #{mapping_nn_forward.1} parent=0 // pred_check
    _
  $region31: #{mapping_nn_forward.1} parent=0 // pred_check_branch
    %33 = sbr.rel (0) target = $region33
  $region32: #{mapping_nn_forward.1} parent=0 // pred_region
    _
  $region33: #{mapping_nn_forward.1} parent=0 // pred_fallthru
    _
  // Predicated region
  $region34: #{mapping_nn_forward.1} parent=0 // pred_check
    _
  $region35: #{mapping_nn_forward.1} parent=0 // pred_check_branch
    %35 = sbr.rel (0) target = $region37
  $region36: #{mapping_nn_forward.1} parent=0 // pred_region
    _
  $region37: #{mapping_nn_forward.1} parent=0 // pred_fallthru
    _
  // Predicated region
  $region38: #{mapping_nn_forward.1} parent=0 // pred_check
    _
  $region39: #{mapping_nn_forward.1} parent=0 // pred_check_branch
    %37 = sbr.rel (0) target = $region41
  $region40: #{mapping_nn_forward.1} parent=0 // pred_region
    _
  $region41: #{mapping_nn_forward.1} parent=0 // pred_fallthru
    _
  // Predicated region
  $region42: #{mapping_nn_forward.1} parent=0 // pred_check
    _
  $region43: #{mapping_nn_forward.1} parent=0 // pred_check_branch
    %39 = sbr.rel (0) target = $region45
  $region44: #{mapping_nn_forward.1} parent=0 // pred_region
    _
  $region45: #{mapping_nn_forward.1} parent=0 // pred_fallthru
    _
  %v41 = vld [vmem:[%s0] sm:$0xf]
  %v42 = vld [vmem:[%s0 + $0x4] sm:$0xf]
  %v43 = vld [vmem:[%s0 + $0x8] sm:$0xf]
  %v44 = vld [vmem:[%s0 + $0xc] sm:$0xf]
  %v45 = vld [vmem:[%s1] sm:$0xf]
  %v46 = vld [vmem:[%s1 + $0x4] sm:$0xf]
  %v47 = vld [vmem:[%s1 + $0x8] sm:$0xf]
  %v48 = vld [vmem:[%s1 + $0xc] sm:$0xf]
  %v49 = vld [vmem:[%s1 + $0x10] sm:$0xf]
  %v50 = vld [vmem:[%s1 + $0x14] sm:$0xf]
  %v51 = vld [vmem:[%s1 + $0x18] sm:$0xf]
  %v52 = vld [vmem:[%s1 + $0x1c] sm:$0xf]
  %v53 = vld [vmem:[%s1 + $0x20] sm:$0xf]
  %v54 = vld [vmem:[%s1 + $0x24] sm:$0xf]
  %v55 = vld [vmem:[%s1 + $0x28] sm:$0xf]
  %v56 = vld [vmem:[%s1 + $0x2c] sm:$0xf]
  %v57 = vld [vmem:[%s1 + $0x30] sm:$0xf]
  %v58 = vld [vmem:[%s1 + $0x34] sm:$0xf]
  %v59 = vld [vmem:[%s1 + $0x38] sm:$0xf]
  %v60 = vld [vmem:[%s1 + $0x3c] sm:$0xf]
  %v61 = vld [vmem:[%s2] sm:$0xff]
  %v62 = vld [vmem:[%s2 + $0x8] sm:$0xff]
  %v63 = vld [vmem:[%s2 + $0x10] sm:$0xff]
  %v64 = vld [vmem:[%s2 + $0x18] sm:$0xff]
  %v65 = vld [vmem:[%s2 + $0x20] sm:$0xff]
  %v66 = vld [vmem:[%s2 + $0x28] sm:$0xff]
  %v67 = vld [vmem:[%s2 + $0x30] sm:$0xff]
  %v68 = vld [vmem:[%s2 + $0x38] sm:$0xff]
  %v69 = vld [vmem:[%s2 + $0x40] sm:$0xff]
  %v70 = vld [vmem:[%s2 + $0x48] sm:$0xff]
  %v71 = vld [vmem:[%s2 + $0x50] sm:$0xff]
  %v72 = vld [vmem:[%s2 + $0x58] sm:$0xff]
  %v73 = vld [vmem:[%s2 + $0x60] sm:$0xff]
  %v74 = vld [vmem:[%s2 + $0x68] sm:$0xff]
  %v75 = vld [vmem:[%s2 + $0x70] sm:$0xff]
  %v76 = vld [vmem:[%s2 + $0x78] sm:$0xff]
  %78 = vset.pattern.permute.xlu0 0
  %79 = vperm.xlu0 %78, %v61
  %v80 = vpop.permute.xlu0 %79
  %83 = vset.pattern.permute.xlu0 0
  %84 = vperm.xlu0 %83, %v62
  %v85 = vpop.permute.xlu0 %84
  %88 = vset.pattern.permute.xlu0 0
  %89 = vperm.xlu0 %88, %v63
  %v90 = vpop.permute.xlu0 %89
  %93 = vset.pattern.permute.xlu0 0
  %94 = vperm.xlu0 %93, %v64
  %v95 = vpop.permute.xlu0 %94
  %98 = vset.pattern.permute.xlu0 0
  %99 = vperm.xlu0 %98, %v65
  %v100 = vpop.permute.xlu0 %99
  %103 = vset.pattern.permute.xlu0 0
  %104 = vperm.xlu0 %103, %v66
  %v105 = vpop.permute.xlu0 %104
  %108 = vset.pattern.permute.xlu0 0
  %109 = vperm.xlu0 %108, %v67
  %v110 = vpop.permute.xlu0 %109
  %113 = vset.pattern.permute.xlu0 0
  %114 = vperm.xlu0 %113, %v68
  %v115 = vpop.permute.xlu0 %114
  %118 = vset.pattern.permute.xlu0 0
  %119 = vperm.xlu0 %118, %v69
  %v120 = vpop.permute.xlu0 %119
  %123 = vset.pattern.permute.xlu0 0
  %124 = vperm.xlu0 %123, %v70
  %v125 = vpop.permute.xlu0 %124
  %128 = vset.pattern.permute.xlu0 0
  %129 = vperm.xlu0 %128, %v71
  %v130 = vpop.permute.xlu0 %129
  %133 = vset.pattern.permute.xlu0 0
  %134 = vperm.xlu0 %133, %v72
  %v135 = vpop.permute.xlu0 %134
  %138 = vset.pattern.permute.xlu0 0
  %139 = vperm.xlu0 %138, %v73
  %v140 = vpop.permute.xlu0 %139
  %143 = vset.pattern.permute.xlu0 0
  %144 = vperm.xlu0 %143, %v74
  %v145 = vpop.permute.xlu0 %144
  %148 = vset.pattern.permute.xlu0 0
  %149 = vperm.xlu0 %148, %v75
  %v150 = vpop.permute.xlu0 %149
  %153 = vset.pattern.permute.xlu0 0
  %154 = vperm.xlu0 %153, %v76
  %v155 = vpop.permute.xlu0 %154
  %v173 = vunpack.c.l.b16 %v45
  %v174 = vunpack.c.l.b16 %v46
  %v175 = vunpack.c.l.b16 %v47
  %v176 = vunpack.c.l.b16 %v48
  %v177 = vunpack.c.l.b16 %v49
  %v178 = vunpack.c.l.b16 %v50
  %v179 = vunpack.c.l.b16 %v51
  %v180 = vunpack.c.l.b16 %v52
  %v181 = vunpack.c.l.b16 %v53
  %v182 = vunpack.c.l.b16 %v54
  %v183 = vunpack.c.l.b16 %v55
  %v184 = vunpack.c.l.b16 %v56
  %v185 = vunpack.c.l.b16 %v57
  %v186 = vunpack.c.l.b16 %v58
  %v187 = vunpack.c.l.b16 %v59
  %v188 = vunpack.c.l.b16 %v60
  %v189 = vpack.c.b16 %v174, %v173
  %v190 = vpack.c.b16 %v176, %v175
  %v191 = vpack.c.b16 %v178, %v177
  %v192 = vpack.c.b16 %v180, %v179
  %v193 = vpack.c.b16 %v182, %v181
  %v194 = vpack.c.b16 %v184, %v183
  %v195 = vpack.c.b16 %v186, %v185
  %v196 = vpack.c.b16 %v188, %v187
  %v201 = vunpack.c.l.b16 %v41
  %v202 = vunpack.c.l.b16 %v42
  %v203 = vunpack.c.l.b16 %v43
  %v204 = vunpack.c.l.b16 %v44
  %v205 = vpack.c.b16 %v202, %v201
  %v206 = vpack.c.b16 %v204, %v203
  %vm209 = vcmask 261120
  %v211 = vsel %vm209, %v189, 0
  %v214 = vsel %vm209, %v190, 0
  %v217 = vsel %vm209, %v191, 0
  %v220 = vsel %vm209, %v192, 0
  %v223 = vsel %vm209, %v193, 0
  %v226 = vsel %vm209, %v194, 0
  %v229 = vsel %vm209, %v195, 0
  %v232 = vsel %vm209, %v196, 0
  %234 = vmatpush.bf16.msra.mxu0 0
  %235 = vmatpush.bf16.msra.mxu0 0
  %236 = vmatpush.bf16.msra.mxu0 0
  %237 = vmatpush.bf16.msra.mxu0 0
  %238 = vmatpush.bf16.msra.mxu0 0
  %239 = vmatpush.bf16.msra.mxu0 0
  %240 = vmatpush.bf16.msra.mxu0 %v206
  %241 = vmatpush.bf16.msra.mxu0 %v205
  %242 = vmatmul.bf16.gmra.mxu0 %v211
  %v243 = vpop.f32.mrf.mxu0
  %v244 = vadd.f32 %v80, %v243
  %v245 = vpop.f32.mrf.mxu0
  %v246 = vadd.f32 %v85, %v245
  %247 = vmatmul.bf16.gmra.mxu0 %v214
  %v248 = vpop.f32.mrf.mxu0
  %v249 = vadd.f32 %v90, %v248
  %v250 = vpop.f32.mrf.mxu0
  %v251 = vadd.f32 %v95, %v250
  %252 = vmatmul.bf16.gmra.mxu0 %v217
  %v253 = vpop.f32.mrf.mxu0
  %v254 = vadd.f32 %v100, %v253
  %v255 = vpop.f32.mrf.mxu0
  %v256 = vadd.f32 %v105, %v255
  %257 = vmatmul.bf16.gmra.mxu0 %v220
  %v258 = vpop.f32.mrf.mxu0
  %v259 = vadd.f32 %v110, %v258
  %v260 = vpop.f32.mrf.mxu0
  %v261 = vadd.f32 %v115, %v260
  %262 = vmatmul.bf16.gmra.mxu0 %v223
  %v263 = vpop.f32.mrf.mxu0
  %v264 = vadd.f32 %v120, %v263
  %v265 = vpop.f32.mrf.mxu0
  %v266 = vadd.f32 %v125, %v265
  %267 = vmatmul.bf16.gmra.mxu0 %v226
  %v268 = vpop.f32.mrf.mxu0
  %v269 = vadd.f32 %v130, %v268
  %v270 = vpop.f32.mrf.mxu0
  %v271 = vadd.f32 %v135, %v270
  %272 = vmatmul.bf16.gmra.mxu0 %v229
  %v273 = vpop.f32.mrf.mxu0
  %v274 = vadd.f32 %v140, %v273
  %v275 = vpop.f32.mrf.mxu0
  %v276 = vadd.f32 %v145, %v275
  %277 = vmatmul.bf16.gmra.mxu0 %v232
  %v278 = vpop.f32.mrf.mxu0
  %v279 = vadd.f32 %v150, %v278
  %v280 = vpop.f32.mrf.mxu0
  %v281 = vadd.f32 %v155, %v280
  %282 = vdwg.mxu0
  %v283 = vmax.f32 %v244, 0.0
  %v284 = vmax.f32 %v246, 0.0
  %v285 = vmax.f32 %v249, 0.0
  %v286 = vmax.f32 %v251, 0.0
  %v287 = vmax.f32 %v254, 0.0
  %v288 = vmax.f32 %v256, 0.0
  %v289 = vmax.f32 %v259, 0.0
  %v290 = vmax.f32 %v261, 0.0
  %v291 = vmax.f32 %v264, 0.0
  %v292 = vmax.f32 %v266, 0.0
  %v293 = vmax.f32 %v269, 0.0
  %v294 = vmax.f32 %v271, 0.0
  %v295 = vmax.f32 %v274, 0.0
  %v296 = vmax.f32 %v276, 0.0
  %v297 = vmax.f32 %v279, 0.0
  %v298 = vmax.f32 %v281, 0.0
  %v299 = vpack.c.bf16 %v284, %v283
  %v300 = vpack.c.bf16 %v286, %v285
  %v301 = vpack.c.bf16 %v288, %v287
  %v302 = vpack.c.bf16 %v290, %v289
  %v303 = vpack.c.bf16 %v292, %v291
  %v304 = vpack.c.bf16 %v294, %v293
  %v305 = vpack.c.bf16 %v296, %v295
  %v306 = vpack.c.bf16 %v298, %v297
  %v307 = vld [vmem:[%s3] sm:$0xf]
  %v308 = vld [vmem:[%s3 + $0x4] sm:$0xf]
  %v309 = vld [vmem:[%s3 + $0x8] sm:$0xf]
  %v310 = vld [vmem:[%s3 + $0xc] sm:$0xf]
  %v311 = vld [vmem:[%s3 + $0x10] sm:$0xf]
  %v312 = vld [vmem:[%s3 + $0x14] sm:$0xf]
  %v313 = vld [vmem:[%s3 + $0x18] sm:$0xf]
  %v314 = vld [vmem:[%s3 + $0x1c] sm:$0xf]
  %v315 = vld [vmem:[%s4] sm:$0xff]
  %v316 = vld [vmem:[%s4 + $0x8] sm:$0xff]
  %v317 = vld [vmem:[%s4 + $0x10] sm:$0xff]
  %v318 = vld [vmem:[%s4 + $0x18] sm:$0xff]
  %v319 = vld [vmem:[%s4 + $0x20] sm:$0xff]
  %v320 = vld [vmem:[%s4 + $0x28] sm:$0xff]
  %v321 = vld [vmem:[%s4 + $0x30] sm:$0xff]
  %v322 = vld [vmem:[%s4 + $0x38] sm:$0xff]
  %324 = vset.pattern.permute.xlu0 0
  %325 = vperm.xlu0 %324, %v315
  %v326 = vpop.permute.xlu0 %325
  %329 = vset.pattern.permute.xlu0 0
  %330 = vperm.xlu0 %329, %v316
  %v331 = vpop.permute.xlu0 %330
  %334 = vset.pattern.permute.xlu0 0
  %335 = vperm.xlu0 %334, %v317
  %v336 = vpop.permute.xlu0 %335
  %339 = vset.pattern.permute.xlu0 0
  %340 = vperm.xlu0 %339, %v318
  %v341 = vpop.permute.xlu0 %340
  %344 = vset.pattern.permute.xlu0 0
  %345 = vperm.xlu0 %344, %v319
  %v346 = vpop.permute.xlu0 %345
  %349 = vset.pattern.permute.xlu0 0
  %350 = vperm.xlu0 %349, %v320
  %v351 = vpop.permute.xlu0 %350
  %354 = vset.pattern.permute.xlu0 0
  %355 = vperm.xlu0 %354, %v321
  %v356 = vpop.permute.xlu0 %355
  %359 = vset.pattern.permute.xlu0 0
  %360 = vperm.xlu0 %359, %v322
  %v361 = vpop.permute.xlu0 %360
  %v371 = vunpack.c.l.b16 %v307
  %v372 = vunpack.c.l.b16 %v308
  %v373 = vunpack.c.l.b16 %v309
  %v374 = vunpack.c.l.b16 %v310
  %v375 = vunpack.c.l.b16 %v311
  %v376 = vunpack.c.l.b16 %v312
  %v377 = vunpack.c.l.b16 %v313
  %v378 = vunpack.c.l.b16 %v314
  %v379 = vpack.c.b16 %v372, %v371
  %v380 = vpack.c.b16 %v374, %v373
  %v381 = vpack.c.b16 %v376, %v375
  %v382 = vpack.c.b16 %v378, %v377
  %387 = vmatpush.bf16.msra.mxu0 %v306
  %388 = vmatpush.bf16.msra.mxu0 %v305
  %389 = vmatpush.bf16.msra.mxu0 %v304
  %390 = vmatpush.bf16.msra.mxu0 %v303
  %391 = vmatpush.bf16.msra.mxu0 %v302
  %392 = vmatpush.bf16.msra.mxu0 %v301
  %393 = vmatpush.bf16.msra.mxu0 %v300
  %394 = vmatpush.bf16.msra.mxu0 %v299
  %395 = vmatmul.bf16.gmra.mxu0 %v379
  %v396 = vpop.f32.mrf.mxu0
  %v397 = vadd.f32 %v326, %v396
  %v398 = vpop.f32.mrf.mxu0
  %v399 = vadd.f32 %v331, %v398
  %400 = vmatmul.bf16.gmra.mxu0 %v380
  %v401 = vpop.f32.mrf.mxu0
  %v402 = vadd.f32 %v336, %v401
  %v403 = vpop.f32.mrf.mxu0
  %v404 = vadd.f32 %v341, %v403
  %405 = vmatmul.bf16.gmra.mxu0 %v381
  %v406 = vpop.f32.mrf.mxu0
  %v407 = vadd.f32 %v346, %v406
  %v408 = vpop.f32.mrf.mxu0
  %v409 = vadd.f32 %v351, %v408
  %410 = vmatmul.bf16.gmra.mxu0 %v382
  %v411 = vpop.f32.mrf.mxu0
  %v412 = vadd.f32 %v356, %v411
  %v413 = vpop.f32.mrf.mxu0
  %v414 = vadd.f32 %v361, %v413
  %415 = vdwg.mxu0
  %v416 = vmax.f32 %v397, 0.0
  %v417 = vmax.f32 %v399, 0.0
  %v418 = vmax.f32 %v402, 0.0
  %v419 = vmax.f32 %v404, 0.0
  %v420 = vmax.f32 %v407, 0.0
  %v421 = vmax.f32 %v409, 0.0
  %v422 = vmax.f32 %v412, 0.0
  %v423 = vmax.f32 %v414, 0.0
  %v424 = vpack.c.bf16 %v417, %v416
  %v425 = vpack.c.bf16 %v419, %v418
  %v426 = vpack.c.bf16 %v421, %v420
  %v427 = vpack.c.bf16 %v423, %v422
  %v428 = vld [vmem:[%s5] sm:$0xf]
  %v429 = vld [vmem:[%s5 + $0x4] sm:$0xf]
  %v430 = vld [vmem:[%s5 + $0x8] sm:$0xf]
  %v431 = vld [vmem:[%s5 + $0xc] sm:$0xf]
  %v432 = vld [vmem:[%s6] sm:$0xff]
  %v433 = vld [vmem:[%s6 + $0x8] sm:$0xff]
  %v434 = vld [vmem:[%s6 + $0x10] sm:$0xff]
  %v435 = vld [vmem:[%s6 + $0x18] sm:$0xff]
  %437 = vset.pattern.permute.xlu0 0
  %438 = vperm.xlu0 %437, %v432
  %v439 = vpop.permute.xlu0 %438
  %442 = vset.pattern.permute.xlu0 0
  %443 = vperm.xlu0 %442, %v433
  %v444 = vpop.permute.xlu0 %443
  %447 = vset.pattern.permute.xlu0 0
  %448 = vperm.xlu0 %447, %v434
  %v449 = vpop.permute.xlu0 %448
  %452 = vset.pattern.permute.xlu0 0
  %453 = vperm.xlu0 %452, %v435
  %v454 = vpop.permute.xlu0 %453
  %v460 = vunpack.c.l.b16 %v428
  %v461 = vunpack.c.l.b16 %v429
  %v462 = vunpack.c.l.b16 %v430
  %v463 = vunpack.c.l.b16 %v431
  %v464 = vpack.c.b16 %v461, %v460
  %v465 = vpack.c.b16 %v463, %v462
  %vm466 = vcmask 523264
  %v468 = vsel %vm466, %v464, 0
  %v471 = vsel %vm466, %v465, 0
  %473 = vmatpush.bf16.msra.mxu0 0
  %474 = vmatpush.bf16.msra.mxu0 0
  %475 = vmatpush.bf16.msra.mxu0 0
  %476 = vmatpush.bf16.msra.mxu0 0
  %477 = vmatpush.bf16.msra.mxu0 %v427
  %478 = vmatpush.bf16.msra.mxu0 %v426
  %479 = vmatpush.bf16.msra.mxu0 %v425
  %480 = vmatpush.bf16.msra.mxu0 %v424
  %481 = vmatmul.bf16.gmra.mxu0 %v468
  %v482 = vpop.f32.mrf.mxu0
  %v483 = vadd.f32 %v439, %v482
  %v484 = vpop.f32.mrf.mxu0
  %v485 = vadd.f32 %v444, %v484
  %486 = vmatmul.bf16.gmra.mxu0 %v471
  %v487 = vpop.f32.mrf.mxu0
  %v488 = vadd.f32 %v449, %v487
  %v489 = vpop.f32.mrf.mxu0
  %v490 = vadd.f32 %v454, %v489
  %491 = vdwg.mxu0
  %v492 = vmax.f32 %v483, 0.0
  %v493 = vmax.f32 %v485, 0.0
  %v494 = vmax.f32 %v488, 0.0
  %v495 = vmax.f32 %v490, 0.0
  %v496 = vpack.c.bf16 %v493, %v492
  %v497 = vpack.c.bf16 %v495, %v494
  %v498 = vld [vmem:[%s7] sm:$0xf]
  %v499 = vld [vmem:[%s7 + $0x4] sm:$0xf]
  %v500 = vld [vmem:[%s8] sm:$0xff]
  %v501 = vld [vmem:[%s8 + $0x8] sm:$0xff]
  %503 = vset.pattern.permute.xlu0 0
  %504 = vperm.xlu0 %503, %v500
  %v505 = vpop.permute.xlu0 %504
  %508 = vset.pattern.permute.xlu0 0
  %509 = vperm.xlu0 %508, %v501
  %v510 = vpop.permute.xlu0 %509
  %v514 = vunpack.c.l.b16 %v498
  %v515 = vunpack.c.l.b16 %v499
  %v516 = vpack.c.b16 %v515, %v514
  %v518 = vsel %vm209, %v516, 0
  %520 = vmatpush.bf16.msra.mxu0 0
  %521 = vmatpush.bf16.msra.mxu0 0
  %522 = vmatpush.bf16.msra.mxu0 0
  %523 = vmatpush.bf16.msra.mxu0 0
  %524 = vmatpush.bf16.msra.mxu0 0
  %525 = vmatpush.bf16.msra.mxu0 0
  %526 = vmatpush.bf16.msra.mxu0 %v497
  %527 = vmatpush.bf16.msra.mxu0 %v496
  %528 = vmatmul.bf16.gmra.mxu0 %v518
  %v529 = vpop.f32.mrf.mxu0
  %v530 = vadd.f32 %v505, %v529
  %v531 = vpop.f32.mrf.mxu0
  %v532 = vadd.f32 %v510, %v531
  %533 = vdwg.mxu0
  %v534 = vmax.f32 %v530, 0.0
  %v535 = vmax.f32 %v532, 0.0
  %v536 = vld [vmem:[%s9] sm:$0xff]
  %v537 = vld [vmem:[%s9 + $0x8] sm:$0xff]
  %539 = vset.pattern.permute.xlu0 0
  %540 = vperm.xlu0 %539, %v536
  %v541 = vpop.permute.xlu0 %540
  %544 = vset.pattern.permute.xlu0 0
  %545 = vperm.xlu0 %544, %v537
  %v546 = vpop.permute.xlu0 %545
  %v548 = vmul.f32 %v534, %v541
  %v549 = vmul.f32 %v535, %v546
  %v550 = vadd.f32 %v548, %v549
  %v551 = vrot.slane %v550, 4
  %v552 = vadd.f32 %v550, %v551
  %v553 = vrot.slane %v552, 2
  %v554 = vadd.f32 %v552, %v553
  %v555 = vrot.slane %v554, 1
  %v556 = vadd.f32 %v554, %v555
  %v557 = vld [vmem:[#allocation2] sm:$0x1]
  %559 = vset.pattern.permute.xlu0 0
  %560 = vperm.xlu0 %559, %v557
  %v561 = vpop.permute.xlu0 %560
  %v563 = vperm.slane %v561, 0
  %v564 = vadd.f32 %v556, %v563
  %v565 = vxor.u32 %v564, 2147483648
  %v566 = vmul.f32 %v565, 1.442695
  %v567 = vpow.pop %v566
  %v568 = vadd.f32 %v567, 1.0
  %v569 = vrcp.pop %v568
  %v570 = vmul.f32 %v568, %v569
  %v571 = vsub.f32 1.0, %v570
  %v572 = vmul.f32 %v569, %v571
  %v573 = vadd.f32 %v569, %v572
  %vm574 = vweird.f32 %v568
  %vm575 = vweird.f32 %v569
  %vm576 = vmor %vm574, %vm575
  %v577 = vsel %vm576, %v569, %v573
  %v578 = vand.u32 2147483647, %v568
  %vm579 = vcmp.eq.f32.partialorder %v578, 8.507059e+37
  %v580 = vand.u32 %v568, 2147483648
  %v581 = vor.u32 1.1754944e-38, %v580
  %v582 = vsel %vm579, %v581, %v577
  %v583 = vmul.f32 1.0, %v582
  %v584 = vmul.f32 %v583, 5.0
  %v585 = vadd.f32 %v584, 2.0
  %586 = vst [vmem:[%s11] sm:$0x1] %v585
  // Predicated region
  $region46: #{mapping_nn_forward.1} parent=0 // pred_check
    _
  $region47: #{mapping_nn_forward.1} parent=0 // pred_check_branch
    %588 = sbr.rel (0) target = $region49
  $region48: #{mapping_nn_forward.1} parent=0 // pred_region
    _
  $region49: #{mapping_nn_forward.1} parent=0 // pred_fallthru
    _
  // Predicated region
  $region50: #{mapping_nn_forward.1} parent=0 // pred_check
    _
  $region51: #{mapping_nn_forward.1} parent=0 // pred_check_branch
    %590 = sbr.rel (0) target = $region53
  $region52: #{mapping_nn_forward.1} parent=0 // pred_region
    _
  $region53: #{mapping_nn_forward.1} parent=0 // pred_fallthru
    _

</llo_original>
